<compile_context>
chip_gen: v6e
topology: v6e:2x2x1
jax: 0.10.0
libtpu: 0.0.40
codegen_flags: <defaults>
</compile_context>

<pallas_src>
import jax
import jax.numpy as jnp
import numpy as np
from jax.experimental import pallas as pl
from jax.experimental.pallas import tpu as pltpu


def sp_filter_kernel(u_ref, halo_ref, o_ref):
    tx, ny = u_ref.shape
    out_dtype = o_ref.dtype

    u = u_ref[...].astype(jnp.float32)               # (tx, ny) tile
    hup = halo_ref[0:1, :].astype(jnp.float32)       # global row above the tile
    hdn = halo_ref[1:2, :].astype(jnp.float32)       # global row below the tile

    # (1, ny) mask row: +1 at column 0, -1 at column ny-1, 0 elsewhere.
    # Turns the circular y result into the replicate (clamped) result with one
    # fused multiply-add instead of full-field iota/where/select passes.
    col = jax.lax.broadcasted_iota(jnp.int32, (1, ny), 1)
    edge = (col == 0).astype(jnp.float32) - (col == ny - 1).astype(jnp.float32)

    def y_pass(sx):
        # [1, 2, 1] / 4 along the lane axis, replicate boundary.
        nbr = pltpu.roll(sx, 1, axis=1) + pltpu.roll(sx, ny - 1, axis=1)
        d = sx[:, 0:1] - sx[:, ny - 1:ny]
        return 0.25 * (2.0 * sx + nbr + d * edge)

    # x pass: [1, 2, 1] / 4 with circular wrap *within the tile*.  Rows 0 and
    # tx-1 are wrong here (they wrapped inside the tile) and are rewritten
    # below with the true halo neighbours -- the y pass is row-local, so the
    # wrong rows do not contaminate any other output row.
    nbr_x = pltpu.roll(u, 1, axis=0) + pltpu.roll(u, tx - 1, axis=0)
    sx = 0.25 * (2.0 * u + nbr_x)
    o_ref[...] = y_pass(sx).astype(out_dtype)

    # Boundary rows with the correct (cross-tile / circular) x neighbours.
    top = 0.25 * (hup + 2.0 * u[0:1, :] + u[1:2, :])
    bot = 0.25 * (u[tx - 2:tx - 1, :] + 2.0 * u[tx - 1:tx, :] + hdn)
    o_ref[0:1, :] = y_pass(top).astype(out_dtype)
    o_ref[tx - 1:tx, :] = y_pass(bot).astype(out_dtype)


def _pick_tile_x(nx, max_tile=192):
    """Largest multiple-of-8 divisor of nx <= max_tile, preferring >= 2 tiles."""
    best_any = None
    best_multi = None
    for t in range(8, min(max_tile, nx) + 1, 8):
        if nx % t == 0:
            best_any = t
            if nx // t >= 2:
                best_multi = t
    if best_multi is not None:
        return best_multi
    if best_any is not None:
        return best_any
    return nx  # whole-field fallback (block dim == full array dim is legal)


def sp_filter_forward(u, max_tile_x=192):
    """Pallas SP_Filter forward. u: (..., Nx, Ny); returns same shape & dtype
    (float64 inputs are computed and returned in float32)."""
    orig_shape = u.shape
    nx, ny = orig_shape[-2], orig_shape[-1]
    if nx < 2 or ny < 2:
        raise ValueError("sp_filter_forward requires Nx >= 2 and Ny >= 2")

    # TODO(synk): no f64 vector path on TPU -> compute/return float32 for f64.
    if u.dtype == jnp.float64:
        u = u.astype(jnp.float32)

    u3 = u.reshape((-1, nx, ny))
    b = u3.shape[0]
    dtype = u3.dtype

    tile_x = _pick_tile_x(nx, max_tile_x)
    nt = nx // tile_x  # exact: tile_x divides nx, or tile_x == nx (nt == 1)

    # Tiny halo gather: for tile t, the global row above and below it (with
    # circular wrap).  (b, nt, 2, ny) -- a few KB, not a full-field pad.
    starts = np.arange(nt) * tile_x
    halo_idx = np.stack([(starts - 1) % nx, (starts + tile_x) % nx],
                        axis=1).astype(np.int32)            # (nt, 2)
    halos = u3[:, halo_idx, :]                               # (b, nt, 2, ny)

    # Right-sized VMEM budget: ~10x the f32 tile covers double-buffered
    # in/out blocks plus compute temporaries, with 8 MiB floor / 48 MiB cap.
    vmem_limit = int(min(48 * 1024 * 1024,
                         max(8 * 1024 * 1024, 10 * tile_x * ny * 4)))

    out = pl.pallas_call(
        sp_filter_kernel,
        out_shape=jax.ShapeDtypeStruct((b, nx, ny), dtype),
        grid=(b, nt),
        in_specs=[
            pl.BlockSpec((None, tile_x, ny), lambda bi, ti: (bi, ti, 0)),
            pl.BlockSpec((None, None, 2, ny), lambda bi, ti: (bi, ti, 0, 0)),
        ],
        out_specs=pl.BlockSpec((None, tile_x, ny), lambda bi, ti: (bi, ti, 0)),
        compiler_params=pltpu.CompilerParams(
            dimension_semantics=("parallel", "parallel"),
            vmem_limit_bytes=vmem_limit,
        ),
    )(u3, halos)
    return out.reshape(orig_shape)


# ----------------------------------------------------------------------------
# Pure-JAX reference that mirrors the torch forward exactly (batch product 1).
# ----------------------------------------------------------------------------
def sp_filter_reference(u):
    orig_shape = u.shape
    nx, ny = orig_shape[-2], orig_shape[-1]
    u2 = jnp.asarray(u, jnp.float32).reshape(nx, ny)
    # manual y padding exactly as the torch code builds it
    u_pad = jnp.concatenate([u2[:, :1], u2, u2[:, -1:]], axis=1)      # (nx, ny+2)
    # Conv2d(3x3, padding=(1,1), padding_mode='circular'), bias = 0
    up = jnp.pad(u_pad, ((1, 1), (1, 1)), mode="wrap")                # (nx+2, ny+4)
    w = jnp.array([[1.0, 2.0, 1.0],
                   [2.0, 4.0, 2.0],
                   [1.0, 2.0, 1.0]], dtype=jnp.float32) / 16.0
    conv = jnp.zeros((nx, ny + 2), jnp.float32)
    for ki in range(3):
        for kj in range(3):
            conv = conv + w[ki, kj] * up[ki:ki + nx, kj:kj + ny + 2]
    # drop the two manually padded output columns
    return conv[:, 1:ny + 1].reshape(orig_shape)


if __name__ == "__main__":
    k1, k2, k3 = jax.random.split(jax.random.PRNGKey(0), 3)

    # Case 1: f32, Nx=64 -> two 32-row tiles on a (1, 2) fully-parallel grid.
    u1 = jax.random.normal(k1, (1, 64, 128), dtype=jnp.float32)
    out1 = jax.block_until_ready(sp_filter_forward(u1))
    assert out1.shape == u1.shape and out1.dtype == u1.dtype
    np.testing.assert_allclose(np.asarray(out1),
                               np.asarray(sp_filter_reference(u1)),
                               rtol=1e-5, atol=1e-5)

    # Case 2: Nx=20 has no multiple-of-8 divisor -> whole-field fallback block.
    u2 = jax.random.normal(k2, (1, 20, 128), dtype=jnp.float32)
    out2 = jax.block_until_ready(sp_filter_forward(u2))
    np.testing.assert_allclose(np.asarray(out2),
                               np.asarray(sp_filter_reference(u2)),
                               rtol=1e-5, atol=1e-5)

    # Case 3: bf16 in / bf16 out -- the f32 upcast happens inside the kernel.
    u3b = jax.random.normal(k3, (1, 64, 128), dtype=jnp.float32).astype(jnp.bfloat16)
    out3 = jax.block_until_ready(sp_filter_forward(u3b))
    assert out3.dtype == jnp.bfloat16
    np.testing.assert_allclose(np.asarray(out3.astype(jnp.float32)),
                               np.asarray(sp_filter_reference(u3b)),
                               rtol=3e-2, atol=3e-2)

    print("KERNEL_OK")
</pallas_src>

<mosaic_0001>
module attributes {stable_mosaic.version = 11 : i64} {
  func.func @sp_filter_kernel(%arg0: i32, %arg1: i32, %arg2: memref<1x32x128xf32, #tpu.memory_space<vmem>>, %arg3: memref<1x1x2x128xf32, #tpu.memory_space<vmem>>, %arg4: memref<1x32x128xf32, #tpu.memory_space<vmem>>) attributes {dimension_semantics = [#tpu.dimension_semantics<parallel>, #tpu.dimension_semantics<parallel>], iteration_bounds = array<i64: 1, 2>, scalar_prefetch = 0 : i64, scratch_operands = 0 : i64, tpu.core_type = #tpu.core_type<tc>, window_params = [{transform_indices = @transform_0, window_bounds = array<i64: 1, 32, 128>}, {transform_indices = @transform_1, window_bounds = array<i64: 1, 1, 2, 128>}, {transform_indices = @transform_2, window_bounds = array<i64: 1, 32, 128>}]} {
    %c0 = arith.constant 0 : index
    %c0_0 = arith.constant 0 : index
    %c0_1 = arith.constant 0 : index
    %0 = vector.load %arg2[%c0, %c0_0, %c0_1] : memref<1x32x128xf32, #tpu.memory_space<vmem>>, vector<1x32x128xf32>
    %1 = vector.shape_cast %0 : vector<1x32x128xf32> to vector<32x128xf32>
    %c0_2 = arith.constant 0 : index
    %c0_3 = arith.constant 0 : index
    %c0_4 = arith.constant 0 : index
    %c0_5 = arith.constant 0 : index
    %2 = vector.load %arg3[%c0_2, %c0_3, %c0_4, %c0_5] : memref<1x1x2x128xf32, #tpu.memory_space<vmem>>, vector<1x1x1x128xf32>
    %3 = vector.shape_cast %2 : vector<1x1x1x128xf32> to vector<1x128xf32>
    %c0_6 = arith.constant 0 : index
    %c0_7 = arith.constant 0 : index
    %c1 = arith.constant 1 : index
    %c0_8 = arith.constant 0 : index
    %4 = vector.load %arg3[%c0_6, %c0_7, %c1, %c0_8] : memref<1x1x2x128xf32, #tpu.memory_space<vmem>>, vector<1x1x1x128xf32>
    %5 = vector.shape_cast %4 : vector<1x1x1x128xf32> to vector<1x128xf32>
    %6 = tpu.iota {dimensions = array<i32: 1>} : vector<1x128xi32>
    %c0_i32 = arith.constant 0 : i32
    %7 = vector.broadcast %c0_i32 : i32 to vector<1x128xi32>
    %8 = arith.cmpi eq, %6, %7 : vector<1x128xi32>
    %9 = arith.extui %8 : vector<1x128xi1> to vector<1x128xi32>
    %10 = arith.sitofp %9 : vector<1x128xi32> to vector<1x128xf32>
    %c127_i32 = arith.constant 127 : i32
    %11 = vector.broadcast %c127_i32 : i32 to vector<1x128xi32>
    %12 = arith.cmpi eq, %6, %11 : vector<1x128xi32>
    %13 = arith.extui %12 : vector<1x128xi1> to vector<1x128xi32>
    %14 = arith.sitofp %13 : vector<1x128xi32> to vector<1x128xf32>
    %15 = arith.subf %10, %14 : vector<1x128xf32>
    %c1_i32 = arith.constant 1 : i32
    %16 = tpu.dynamic_rotate %1 by %c1_i32 dim 0 : vector<32x128xf32>, i32 -> vector<32x128xf32>
    %c31_i32 = arith.constant 31 : i32
    %17 = tpu.dynamic_rotate %1 by %c31_i32 dim 0 : vector<32x128xf32>, i32 -> vector<32x128xf32>
    %18 = arith.addf %16, %17 : vector<32x128xf32>
    %cst = arith.constant 2.000000e+00 : f32
    %19 = vector.broadcast %cst : f32 to vector<32x128xf32>
    %20 = arith.mulf %19, %1 : vector<32x128xf32>
    %21 = arith.addf %20, %18 : vector<32x128xf32>
    %cst_9 = arith.constant 2.500000e-01 : f32
    %22 = vector.broadcast %cst_9 : f32 to vector<32x128xf32>
    %23 = arith.mulf %22, %21 : vector<32x128xf32>
    %c1_i32_10 = arith.constant 1 : i32
    %24 = tpu.dynamic_rotate %23 by %c1_i32_10 dim 1 : vector<32x128xf32>, i32 -> vector<32x128xf32>
    %c127_i32_11 = arith.constant 127 : i32
    %25 = tpu.dynamic_rotate %23 by %c127_i32_11 dim 1 : vector<32x128xf32>, i32 -> vector<32x128xf32>
    %26 = arith.addf %24, %25 : vector<32x128xf32>
    %27 = vector.extract_strided_slice %23 {offsets = [0, 0], sizes = [32, 1], strides = [1, 1]} : vector<32x128xf32> to vector<32x1xf32>
    %28 = vector.extract_strided_slice %23 {offsets = [0, 127], sizes = [32, 1], strides = [1, 1]} : vector<32x128xf32> to vector<32x1xf32>
    %29 = arith.subf %27, %28 : vector<32x1xf32>
    %cst_12 = arith.constant 2.000000e+00 : f32
    %30 = vector.broadcast %cst_12 : f32 to vector<32x128xf32>
    %31 = arith.mulf %30, %23 : vector<32x128xf32>
    %32 = arith.addf %31, %26 : vector<32x128xf32>
    %33 = vector.broadcast %29 : vector<32x1xf32> to vector<32x128xf32>
    %34 = vector.broadcast %15 : vector<1x128xf32> to vector<32x128xf32>
    %35 = arith.mulf %33, %34 : vector<32x128xf32>
    %36 = arith.addf %32, %35 : vector<32x128xf32>
    %cst_13 = arith.constant 2.500000e-01 : f32
    %37 = vector.broadcast %cst_13 : f32 to vector<32x128xf32>
    %38 = arith.mulf %37, %36 : vector<32x128xf32>
    %c0_14 = arith.constant 0 : index
    %c0_15 = arith.constant 0 : index
    %c0_16 = arith.constant 0 : index
    %39 = vector.load %arg4[%c0_14, %c0_15, %c0_16] : memref<1x32x128xf32, #tpu.memory_space<vmem>>, vector<1x32x128xf32>
    %40 = vector.shape_cast %39 : vector<1x32x128xf32> to vector<32x128xf32>
    %41 = vector.shape_cast %38 : vector<32x128xf32> to vector<1x32x128xf32>
    tpu.vector_store %arg4[%c0_14, %c0_15, %c0_16], %41 {strides = array<i32>} : memref<1x32x128xf32, #tpu.memory_space<vmem>>, vector<1x32x128xf32>,
    %42 = vector.extract_strided_slice %1 {offsets = [0, 0], sizes = [1, 128], strides = [1, 1]} : vector<32x128xf32> to vector<1x128xf32>
    %cst_17 = arith.constant 2.000000e+00 : f32
    %43 = vector.broadcast %cst_17 : f32 to vector<1x128xf32>
    %44 = arith.mulf %43, %42 : vector<1x128xf32>
    %45 = arith.addf %3, %44 : vector<1x128xf32>
    %46 = vector.extract_strided_slice %1 {offsets = [1, 0], sizes = [1, 128], strides = [1, 1]} : vector<32x128xf32> to vector<1x128xf32>
    %47 = arith.addf %45, %46 : vector<1x128xf32>
    %cst_18 = arith.constant 2.500000e-01 : f32
    %48 = vector.broadcast %cst_18 : f32 to vector<1x128xf32>
    %49 = arith.mulf %48, %47 : vector<1x128xf32>
    %50 = vector.extract_strided_slice %1 {offsets = [30, 0], sizes = [1, 128], strides = [1, 1]} : vector<32x128xf32> to vector<1x128xf32>
    %51 = vector.extract_strided_slice %1 {offsets = [31, 0], sizes = [1, 128], strides = [1, 1]} : vector<32x128xf32> to vector<1x128xf32>
    %cst_19 = arith.constant 2.000000e+00 : f32
    %52 = vector.broadcast %cst_19 : f32 to vector<1x128xf32>
    %53 = arith.mulf %52, %51 : vector<1x128xf32>
    %54 = arith.addf %50, %53 : vector<1x128xf32>
    %55 = arith.addf %54, %5 : vector<1x128xf32>
    %cst_20 = arith.constant 2.500000e-01 : f32
    %56 = vector.broadcast %cst_20 : f32 to vector<1x128xf32>
    %57 = arith.mulf %56, %55 : vector<1x128xf32>
    %c1_i32_21 = arith.constant 1 : i32
    %58 = tpu.dynamic_rotate %49 by %c1_i32_21 dim 1 : vector<1x128xf32>, i32 -> vector<1x128xf32>
    %c127_i32_22 = arith.constant 127 : i32
    %59 = tpu.dynamic_rotate %49 by %c127_i32_22 dim 1 : vector<1x128xf32>, i32 -> vector<1x128xf32>
    %60 = arith.addf %58, %59 : vector<1x128xf32>
    %61 = vector.extract_strided_slice %49 {offsets = [0, 0], sizes = [1, 1], strides = [1, 1]} : vector<1x128xf32> to vector<1x1xf32>
    %62 = vector.extract_strided_slice %49 {offsets = [0, 127], sizes = [1, 1], strides = [1, 1]} : vector<1x128xf32> to vector<1x1xf32>
    %63 = arith.subf %61, %62 : vector<1x1xf32>
    %cst_23 = arith.constant 2.000000e+00 : f32
    %64 = vector.broadcast %cst_23 : f32 to vector<1x128xf32>
    %65 = arith.mulf %64, %49 : vector<1x128xf32>
    %66 = arith.addf %65, %60 : vector<1x128xf32>
    %67 = vector.broadcast %63 : vector<1x1xf32> to vector<1x128xf32>
    %68 = arith.mulf %67, %15 : vector<1x128xf32>
    %69 = arith.addf %66, %68 : vector<1x128xf32>
    %cst_24 = arith.constant 2.500000e-01 : f32
    %70 = vector.broadcast %cst_24 : f32 to vector<1x128xf32>
    %71 = arith.mulf %70, %69 : vector<1x128xf32>
    %c0_25 = arith.constant 0 : index
    %c0_26 = arith.constant 0 : index
    %c0_27 = arith.constant 0 : index
    %72 = vector.load %arg4[%c0_25, %c0_26, %c0_27] : memref<1x32x128xf32, #tpu.memory_space<vmem>>, vector<1x1x128xf32>
    %73 = vector.shape_cast %72 : vector<1x1x128xf32> to vector<1x128xf32>
    %74 = vector.shape_cast %71 : vector<1x128xf32> to vector<1x1x128xf32>
    tpu.vector_store %arg4[%c0_25, %c0_26, %c0_27], %74 {strides = array<i32>} : memref<1x32x128xf32, #tpu.memory_space<vmem>>, vector<1x1x128xf32>,
    %c1_i32_28 = arith.constant 1 : i32
    %75 = tpu.dynamic_rotate %57 by %c1_i32_28 dim 1 : vector<1x128xf32>, i32 -> vector<1x128xf32>
    %c127_i32_29 = arith.constant 127 : i32
    %76 = tpu.dynamic_rotate %57 by %c127_i32_29 dim 1 : vector<1x128xf32>, i32 -> vector<1x128xf32>
    %77 = arith.addf %75, %76 : vector<1x128xf32>
    %78 = vector.extract_strided_slice %57 {offsets = [0, 0], sizes = [1, 1], strides = [1, 1]} : vector<1x128xf32> to vector<1x1xf32>
    %79 = vector.extract_strided_slice %57 {offsets = [0, 127], sizes = [1, 1], strides = [1, 1]} : vector<1x128xf32> to vector<1x1xf32>
    %80 = arith.subf %78, %79 : vector<1x1xf32>
    %cst_30 = arith.constant 2.000000e+00 : f32
    %81 = vector.broadcast %cst_30 : f32 to vector<1x128xf32>
    %82 = arith.mulf %81, %57 : vector<1x128xf32>
    %83 = arith.addf %82, %77 : vector<1x128xf32>
    %84 = vector.broadcast %80 : vector<1x1xf32> to vector<1x128xf32>
    %85 = arith.mulf %84, %15 : vector<1x128xf32>
    %86 = arith.addf %83, %85 : vector<1x128xf32>
    %cst_31 = arith.constant 2.500000e-01 : f32
    %87 = vector.broadcast %cst_31 : f32 to vector<1x128xf32>
    %88 = arith.mulf %87, %86 : vector<1x128xf32>
    %c0_32 = arith.constant 0 : index
    %c31 = arith.constant 31 : index
    %c0_33 = arith.constant 0 : index
    %89 = vector.load %arg4[%c0_32, %c31, %c0_33] : memref<1x32x128xf32, #tpu.memory_space<vmem>>, vector<1x1x128xf32>
    %90 = vector.shape_cast %89 : vector<1x1x128xf32> to vector<1x128xf32>
    %91 = vector.shape_cast %88 : vector<1x128xf32> to vector<1x1x128xf32>
    tpu.vector_store %arg4[%c0_32, %c31, %c0_33], %91 {strides = array<i32>} : memref<1x32x128xf32, #tpu.memory_space<vmem>>, vector<1x1x128xf32>,
    return
  }
  func.func @transform_0(%arg0: i32, %arg1: i32) -> (i32, i32, i32) {
    %c0_i32 = arith.constant 0 : i32
    %c0_i32_0 = arith.constant 0 : i32
    return %arg0, %arg1, %c0_i32 : i32, i32, i32
  }
  func.func @transform_1(%arg0: i32, %arg1: i32) -> (i32, i32, i32, i32) {
    %c0_i32 = arith.constant 0 : i32
    %c0_i32_0 = arith.constant 0 : i32
    %c0_i32_1 = arith.constant 0 : i32
    return %arg0, %arg1, %c0_i32, %c0_i32_0 : i32, i32, i32, i32
  }
  func.func @transform_2(%arg0: i32, %arg1: i32) -> (i32, i32, i32) {
    %c0_i32 = arith.constant 0 : i32
    %c0_i32_0 = arith.constant 0 : i32
    return %arg0, %arg1, %c0_i32 : i32, i32, i32
  }
}

</mosaic_0001>

<llo_original>
// kernel: tpu_custom_call.1
$region0: #{tpu_custom_call.1}
  #allocation0 [shape = 'u32[]', space=smem, size = 0x4, offset = 0x4, fixed_abs, tag = 'smem constant byte address 0x4 - core index']
  #allocation1 [shape = 'u32[144,128]{1,0:T(1,128)}', space=vmem, size = 0x12000, scoped, tag = 'internal scratch']
  %s0 = inlined_call_operand.hbm [shape: f32[1,64,128], index: 0, kind: input, shape index: {}]
  %s1 = inlined_call_operand.hbm [shape: f32[1,2,2,128], index: 1, kind: input, shape index: {}]
  %s2 = inlined_call_operand.hbm [shape: f32[1,64,128], index: 2, kind: output, shape index: {}]
  %s3 = sld [smem:[#allocation0]]
  $region49: #{tpu_custom_call.1} parent=0
    _
  %s5 = ssub.s32 1, %s3
  %s6 = scalar_select 0, %s5, %s3
  $region1: #{tpu_custom_call.1} parent=0
    #allocation2 [shape = 'u8[32768]{0}', space=vmem, size = 0x8000, scoped, tag = 'input window, operand 0']
    #allocation3 [shape = 's32[2]{0}', space=sflag, size = 0x8, scoped, tag = 'scoped memory for tpu_custom_call.1']
    #allocation4 [shape = 's32[2]{0}', space=sflag, size = 0x8, scoped, tag = 'scoped memory for tpu_custom_call.1']
    #allocation5 [shape = 'u8[2048]{0}', space=vmem, size = 0x800, scoped, tag = 'input window, operand 1']
    #allocation6 [shape = 's32[2]{0}', space=sflag, size = 0x8, scoped, tag = 'scoped memory for tpu_custom_call.1']
    #allocation7 [shape = 'u8[32768]{0}', space=vmem, size = 0x8000, scoped, tag = 'output window, operand 0']
    %7 = vsyncpa [#allocation3], 0
    %s8 = scalar_lea.sflag [#allocation3], 1
    %9 = vsyncpa %s8, 0
    %10 = vsyncpa [#allocation6], 0
    %s11 = scalar_lea.sflag [#allocation6], 1
    %12 = vsyncpa %s11, 0
    %13 = vsyncpa [#allocation4], 0
    %s14 = scalar_lea.sflag [#allocation4], 1
    %15 = vsyncpa %s14, 0
    loop: start=0, step=1, limit=4
    $region2: #{tpu_custom_call.1} parent=1 // loop_pre_header
      _
    $region3: #{tpu_custom_call.1} parent=1 // loop_header
      %s17 = sphi 0, %s21
      %p18 = scmp.ge.s32.totalorder %s17, 4
      %s24 = sphi 0, %s36
      %s25 = sphi 0, %s32
      %s26 = sphi 0, %s24
      %s27 = sphi 0, %s25
      %s28 = sphi 0, %s26
      %s29 = sphi 0, %s27
      %s41 = sphi 0, %s43
      %s44 = sphi 0, %s41
      %s45 = sphi 0, %s44
      %s61 = sphi 0, %s45
      %s69 = sphi 0, %s71
      %s72 = sphi 0, %s69
      %s73 = sphi 0, %s72
      %s89 = sphi 0, %s73
      %s97 = sphi 0, %s99
      %s100 = sphi 0, %s97
      %s101 = sphi 0, %s100
      %s117 = sphi 0, %s101
    $region4: #{tpu_custom_call.1} parent=1 // loop_header_branch
      %20 = sbr.rel (%p18) target = $region8
    $region5: #{tpu_custom_call.1} parent=1 // loop_body
      %s22 = ssub.s32 %s17, 1
      %s23 = ssub.s32 %s17, 2
      %s30 = sadd.s32 1, %s25
      %p31 = scmp.ge.s32.totalorder %s30, 2
      %s32 = scalar_select %p31, 0, %s30
      %s33 = sadd.s32 1, %s24
      %s34 = scalar_select %p31, %s33, %s24
      %p35 = scmp.ge.s32.totalorder %s34, 1
      %s36 = scalar_select %p35, 0, %s34
      %s37 = ssub.s32 %s24, %s36
      %s38 = ssub.s32 %s25, %s32
      %s39 = sor.u32 %s37, %s38
      %p40 = scmp.eq.s32.totalorder %s39, 0
      %s42 = sadd.s32 %s41, 1
      %s43 = scalar_select %p40, %s41, %s42
      %p46 = pneg %p40
      %p47 = scmp.eq.s32.totalorder %s17, 1
      %p48 = por %p46, %p47
      %p49 = scmp.ne.s32.totalorder %s41, %s44
      %p50 = scmp.eq.s32.totalorder %s17, 0
      %p51 = por %p49, %p50
      %p52 = scmp.ne.s32.totalorder %s41, %s44
      %p53 = scmp.eq.s32.totalorder %s22, 1
      %p54 = por %p52, %p53
      %p55 = scmp.ne.s32.totalorder %s44, %s45
      %p56 = scmp.eq.s32.totalorder %s22, 0
      %p57 = por %p55, %p56
      %p58 = scmp.ne.s32.totalorder %s44, %s45
      %p59 = scmp.eq.s32.totalorder %s23, 1
      %p60 = por %p58, %p59
      %p62 = scmp.ne.s32.totalorder %s45, %s61
      %p63 = scmp.eq.s32.totalorder %s23, 0
      %p64 = por %p62, %p63
      %s65 = ssub.s32 %s24, %s36
      %s66 = ssub.s32 %s25, %s32
      %s67 = sor.u32 %s65, %s66
      %p68 = scmp.eq.s32.totalorder %s67, 0
      %s70 = sadd.s32 %s69, 1
      %s71 = scalar_select %p68, %s69, %s70
      %p74 = pneg %p68
      %p75 = scmp.eq.s32.totalorder %s17, 1
      %p76 = por %p74, %p75
      %p77 = scmp.ne.s32.totalorder %s69, %s72
      %p78 = scmp.eq.s32.totalorder %s17, 0
      %p79 = por %p77, %p78
      %p80 = scmp.ne.s32.totalorder %s69, %s72
      %p81 = scmp.eq.s32.totalorder %s22, 1
      %p82 = por %p80, %p81
      %p83 = scmp.ne.s32.totalorder %s72, %s73
      %p84 = scmp.eq.s32.totalorder %s22, 0
      %p85 = por %p83, %p84
      %p86 = scmp.ne.s32.totalorder %s72, %s73
      %p87 = scmp.eq.s32.totalorder %s23, 1
      %p88 = por %p86, %p87
      %p90 = scmp.ne.s32.totalorder %s73, %s89
      %p91 = scmp.eq.s32.totalorder %s23, 0
      %p92 = por %p90, %p91
      %s93 = ssub.s32 %s24, %s36
      %s94 = ssub.s32 %s25, %s32
      %s95 = sor.u32 %s93, %s94
      %p96 = scmp.eq.s32.totalorder %s95, 0
      %s98 = sadd.s32 %s97, 1
      %s99 = scalar_select %p96, %s97, %s98
      %p102 = pneg %p96
      %p103 = scmp.eq.s32.totalorder %s17, 1
      %p104 = por %p102, %p103
      %p105 = scmp.ne.s32.totalorder %s97, %s100
      %p106 = scmp.eq.s32.totalorder %s17, 0
      %p107 = por %p105, %p106
      %p108 = scmp.ne.s32.totalorder %s97, %s100
      %p109 = scmp.eq.s32.totalorder %s22, 1
      %p110 = por %p108, %p109
      %p111 = scmp.ne.s32.totalorder %s100, %s101
      %p112 = scmp.eq.s32.totalorder %s22, 0
      %p113 = por %p111, %p112
      %p114 = scmp.ne.s32.totalorder %s100, %s101
      %p115 = scmp.eq.s32.totalorder %s23, 1
      %p116 = por %p114, %p115
      %p118 = scmp.ne.s32.totalorder %s101, %s117
      %p119 = scmp.eq.s32.totalorder %s23, 0
      %p120 = por %p118, %p119
      %p121 = scmp.le.s32.totalorder 1, %s17
      %p122 = scmp.lt.s32.totalorder %s17, 3
      %p123 = pnand %p121, %p122
      %p124 = pneg %p123
      // Predicated region
      $region9: #{tpu_custom_call.1} parent=5 // pred_check
        _
      $region10: #{tpu_custom_call.1} parent=5 // pred_check_branch
        %126 = sbr.rel (%p123) target = $region12
      $region11: #{tpu_custom_call.1} parent=5 // pred_region
        %s127 = ssub.s32 %s17, 1
      $region12: #{tpu_custom_call.1} parent=5 // pred_fallthru
        _
      %p128 = scmp.lt.s32.totalorder %s17, 2
      // Predicated region
      $region13: #{tpu_custom_call.1} parent=5 // pred_check
        %p129 = pneg %p128
      $region14: #{tpu_custom_call.1} parent=5 // pred_check_branch
        %131 = sbr.rel (%p129) target = $region16
      $region15: #{tpu_custom_call.1} parent=5 // pred_region
        // Predicated region
        $region17: #{tpu_custom_call.1} parent=15 // pred_check
          %p132 = pneg %p51
        $region18: #{tpu_custom_call.1} parent=15 // pred_check_branch
          %134 = sbr.rel (%p132) target = $region20
        $region19: #{tpu_custom_call.1} parent=15 // pred_region
          %s135 = sand.u32 %s41, 1
          %s136 = scalar_lea.sflag [#allocation3], %s135
          %s137 = sand.u32 %s41, 1
          %s138 = smul.addr %s137, 32
          %s139 = scalar_lea.vmem [#allocation2], %s138
          %s140 = smul.u32 4, %s25
          %s142 = ssub.s32 512, 512
          %143 = vsyncadd %s136, %s142
          %s144 = smul.addr %s24, 8
          %s145 = sadd.s32 %s140, %s144
          %s146 = smul.addr %s145, 128
          %s147 = scalar_lea.hbm %s0, %s146
          %s148 = sshll.u32 %s139, 4
          %s149 = int_to_ptr.vmem [resolvable:$true] %s148
          %154 = dma.hbm_to_vmem [thread:$0]  %s147, 512, %s149, %s136, 128, 128, 8
        $region20: #{tpu_custom_call.1} parent=15 // pred_fallthru
          _
        // Predicated region
        $region21: #{tpu_custom_call.1} parent=15 // pred_check
          %p155 = pneg %p79
        $region22: #{tpu_custom_call.1} parent=15 // pred_check_branch
          %157 = sbr.rel (%p155) target = $region24
        $region23: #{tpu_custom_call.1} parent=15 // pred_region
          %s158 = sand.u32 %s69, 1
          %s159 = scalar_lea.sflag [#allocation6], %s158
          %s160 = sand.u32 %s69, 1
          %s161 = smul.addr %s160, 2
          %s162 = scalar_lea.vmem [#allocation5], %s161
          %s164 = ssub.s32 32, 32
          %165 = vsyncadd %s159, %s164
          %s166 = smul.addr %s24, 2
          %s167 = sadd.s32 %s25, %s166
          %s168 = smul.addr %s167, 32
          %s169 = scalar_lea.hbm %s1, %s168
          %s171 = sshll.u32 %s162, 4
          %s172 = int_to_ptr.vmem [resolvable:$true] %s171
          %174 = dma.hbm_to_vmem [thread:$0]  %s169, 32, %s172, %s159
        $region24: #{tpu_custom_call.1} parent=15 // pred_fallthru
          _
      $region16: #{tpu_custom_call.1} parent=5 // pred_fallthru
        _
      %p175 = scmp.le.s32.totalorder 1, %s17
      %p176 = scmp.lt.s32.totalorder %s17, 3
      %p177 = pnand %p175, %p176
      %p178 = pneg %p177
      // Predicated region
      $region25: #{tpu_custom_call.1} parent=5 // pred_check
        _
      $region26: #{tpu_custom_call.1} parent=5 // pred_check_branch
        %180 = sbr.rel (%p177) target = $region28
      $region27: #{tpu_custom_call.1} parent=5 // pred_region
        %s181 = ssub.s32 %s17, 1
        %s182 = sand.u32 %s44, 1
        %s183 = scalar_lea.sflag [#allocation3], %s182
        %s184 = sand.u32 %s44, 1
        %s185 = smul.addr %s184, 32
        %s186 = scalar_lea.vmem [#allocation2], %s185
        // Predicated region
        $region29: #{tpu_custom_call.1} parent=27 // pred_check
          %p187 = pneg %p57
        $region30: #{tpu_custom_call.1} parent=27 // pred_check_branch
          %189 = sbr.rel (%p187) target = $region32
        $region31: #{tpu_custom_call.1} parent=27 // pred_region
          %190 = dma.done %s183, 512
        $region32: #{tpu_custom_call.1} parent=27 // pred_fallthru
          _
        %s191 = sand.u32 %s72, 1
        %s192 = scalar_lea.sflag [#allocation6], %s191
        %s193 = sand.u32 %s72, 1
        %s194 = smul.addr %s193, 2
        %s195 = scalar_lea.vmem [#allocation5], %s194
        // Predicated region
        $region33: #{tpu_custom_call.1} parent=27 // pred_check
          %p196 = pneg %p85
        $region34: #{tpu_custom_call.1} parent=27 // pred_check_branch
          %198 = sbr.rel (%p196) target = $region36
        $region35: #{tpu_custom_call.1} parent=27 // pred_region
          %199 = dma.done %s192, 32
        $region36: #{tpu_custom_call.1} parent=27 // pred_fallthru
          _
        %s200 = sand.u32 %s44, 1
        %s201 = scalar_lea.sflag [#allocation3], %s200
        %s202 = sand.u32 %s44, 1
        %s203 = smul.addr %s202, 32
        %s204 = scalar_lea.vmem [#allocation2], %s203
        %p205 = pneg %p57
        %p206 = pneg %p54
        %s207 = sand.u32 %s72, 1
        %s208 = scalar_lea.sflag [#allocation6], %s207
        %s209 = sand.u32 %s72, 1
        %s210 = smul.addr %s209, 2
        %s211 = scalar_lea.vmem [#allocation5], %s210
        %p212 = pneg %p85
        %p213 = pneg %p82
        %p214 = pneg %p113
        %p215 = pneg %p110
        %s216 = sand.u32 %s100, 1
        %s217 = scalar_lea.sflag [#allocation4], %s216
        %s218 = sand.u32 %s100, 1
        %s219 = smul.addr %s218, 32
        %s220 = scalar_lea.vmem [#allocation7], %s219
        %s221 = smul.u32 4, %s27
        %s222 = smul.u32 4, %s27
        %v223 = vld [vmem:[%s186] sm:$0xff]
        %v224 = vld [vmem:[%s186 + $0x8] sm:$0xff]
        %v225 = vld [vmem:[%s186 + $0x10] sm:$0xff]
        %v226 = vld [vmem:[%s186 + $0x18] sm:$0xff]
        %v227 = vld [vmem:[%s195] sm:$0x1]
        %v228 = vld [vmem:[%s195 + $0x1] sm:$0x1]
        %v229 = vlaneseq
        %v230 = vand.u32 %v229, 127
        %vm231 = vcmp.eq.s32.totalorder %v230, 0
        %v232 = vsel %vm231, 1, 0
        %v233 = vcvt.s32.f32 %v232
        %vm234 = vcmp.eq.s32.totalorder %v230, 127
        %v235 = vsel %vm234, 1, 0
        %v236 = vcvt.s32.f32 %v235
        %v237 = vsub.f32 %v233, %v236
        %v238 = vrot.slane %v223, 7
        %v239 = vrot.slane %v224, 7
        %v240 = vrot.slane %v225, 7
        %v241 = vrot.slane %v226, 7
        %v242 = vlaneseq
        %v243 = vshrl.u32 %v242, 7
        %vm244 = vcmp.lt.s32.totalorder %v243, 1
        %v245 = vsel %vm244, %v240, %v241
        %v246 = vsel %vm244, %v239, %v240
        %v247 = vsel %vm244, %v238, %v239
        %v248 = vsel %vm244, %v241, %v238
        %v249 = vrot.slane %v223, 1
        %v250 = vrot.slane %v224, 1
        %v251 = vrot.slane %v225, 1
        %v252 = vrot.slane %v226, 1
        %vm253 = vcmp.lt.s32.totalorder %v243, 7
        %v254 = vsel %vm253, %v251, %v252
        %v255 = vsel %vm253, %v250, %v251
        %v256 = vsel %vm253, %v249, %v250
        %v257 = vsel %vm253, %v252, %v249
        %v258 = vadd.f32 %v248, %v256
        %v259 = vadd.f32 %v247, %v255
        %v260 = vadd.f32 %v246, %v254
        %v261 = vadd.f32 %v245, %v257
        %v262 = vmul.f32 %v223, 2.0
        %v263 = vmul.f32 %v224, 2.0
        %v264 = vmul.f32 %v225, 2.0
        %v265 = vmul.f32 %v226, 2.0
        %v266 = vadd.f32 %v262, %v258
        %v267 = vadd.f32 %v263, %v259
        %v268 = vadd.f32 %v264, %v260
        %v269 = vadd.f32 %v265, %v261
        %v270 = vmul.f32 %v266, 0.25
        %v271 = vmul.f32 %v267, 0.25
        %v272 = vmul.f32 %v268, 0.25
        %v273 = vmul.f32 %v269, 0.25
        %274 = vrot.lane.b32.xlu0 %v270, 1
        %v275 = vpop.permute.xlu0 %274
        %276 = vrot.lane.b32.xlu0 %v271, 1
        %v277 = vpop.permute.xlu0 %276
        %278 = vrot.lane.b32.xlu0 %v272, 1
        %v279 = vpop.permute.xlu0 %278
        %280 = vrot.lane.b32.xlu0 %v273, 1
        %v281 = vpop.permute.xlu0 %280
        %282 = vrot.lane.b32.xlu0 %v270, 127
        %v283 = vpop.permute.xlu0 %282
        %284 = vrot.lane.b32.xlu0 %v271, 127
        %v285 = vpop.permute.xlu0 %284
        %286 = vrot.lane.b32.xlu0 %v272, 127
        %v287 = vpop.permute.xlu0 %286
        %288 = vrot.lane.b32.xlu0 %v273, 127
        %v289 = vpop.permute.xlu0 %288
        %v290 = vadd.f32 %v275, %v283
        %v291 = vadd.f32 %v277, %v285
        %v292 = vadd.f32 %v279, %v287
        %v293 = vadd.f32 %v281, %v289
        %298 = vrot.lane.b32.xlu0 %v270, 1
        %v299 = vpop.permute.xlu0 %298
        %300 = vrot.lane.b32.xlu0 %v271, 1
        %v301 = vpop.permute.xlu0 %300
        %302 = vrot.lane.b32.xlu0 %v272, 1
        %v303 = vpop.permute.xlu0 %302
        %304 = vrot.lane.b32.xlu0 %v273, 1
        %v305 = vpop.permute.xlu0 %304
        %v310 = vsub.f32 %v270, %v299
        %v311 = vsub.f32 %v271, %v301
        %v312 = vsub.f32 %v272, %v303
        %v313 = vsub.f32 %v273, %v305
        %v314 = vmul.f32 %v270, 2.0
        %v315 = vmul.f32 %v271, 2.0
        %v316 = vmul.f32 %v272, 2.0
        %v317 = vmul.f32 %v273, 2.0
        %v318 = vadd.f32 %v314, %v290
        %v319 = vadd.f32 %v315, %v291
        %v320 = vadd.f32 %v316, %v292
        %v321 = vadd.f32 %v317, %v293
        %323 = vset.pattern.permute.xlu0 0
        %324 = vperm.xlu0 %323, %v310
        %v325 = vpop.permute.xlu0 %324
        %328 = vset.pattern.permute.xlu0 0
        %329 = vperm.xlu0 %328, %v311
        %v330 = vpop.permute.xlu0 %329
        %333 = vset.pattern.permute.xlu0 0
        %334 = vperm.xlu0 %333, %v312
        %v335 = vpop.permute.xlu0 %334
        %338 = vset.pattern.permute.xlu0 0
        %339 = vperm.xlu0 %338, %v313
        %v340 = vpop.permute.xlu0 %339
        %v342 = vmul.f32 %v325, %v237
        %v343 = vmul.f32 %v330, %v237
        %v344 = vmul.f32 %v335, %v237
        %v345 = vmul.f32 %v340, %v237
        %v346 = vadd.f32 %v318, %v342
        %v347 = vadd.f32 %v319, %v343
        %v348 = vadd.f32 %v320, %v344
        %v349 = vadd.f32 %v321, %v345
        %v350 = vmul.f32 %v346, 0.25
        %v351 = vmul.f32 %v347, 0.25
        %v352 = vmul.f32 %v348, 0.25
        %v353 = vmul.f32 %v349, 0.25
        %354 = vst [vmem:[%s220] sm:$0xff] %v350
        %355 = vst [vmem:[%s220 + $0x8] sm:$0xff] %v351
        %356 = vst [vmem:[%s220 + $0x10] sm:$0xff] %v352
        %357 = vst [vmem:[%s220 + $0x18] sm:$0xff] %v353
        %v358 = vadd.f32 %v227, %v262
        %v360 = vrot.slane %v223, 1
        %v362 = vadd.f32 %v358, %v360
        %v363 = vmul.f32 %v362, 0.25
        %v365 = vrot.slane %v265, 1
        %v367 = vadd.f32 %v226, %v365
        %v369 = vrot.slane %v228, 2
        %v371 = vadd.f32 %v367, %v369
        %v372 = vmul.f32 %v371, 0.25
        %373 = vrot.lane.b32.xlu0 %v363, 1
        %v374 = vpop.permute.xlu0 %373
        %375 = vrot.lane.b32.xlu0 %v363, 127
        %v376 = vpop.permute.xlu0 %375
        %v377 = vadd.f32 %v374, %v376
        %379 = vrot.lane.b32.xlu0 %v363, 1
        %v380 = vpop.permute.xlu0 %379
        %v382 = vsub.f32 %v363, %v380
        %v383 = vmul.f32 %v363, 2.0
        %v384 = vadd.f32 %v383, %v377
        %386 = vset.pattern.permute.xlu0 0
        %387 = vperm.xlu0 %386, %v382
        %v388 = vpop.permute.xlu0 %387
        %v390 = vmul.f32 %v388, %v237
        %v391 = vadd.f32 %v384, %v390
        %v392 = vmul.f32 %v391, 0.25
        %393 = vst [vmem:[%s220] sm:$0x1] %v392
        %v395 = vrot.slane %v372, 6
        %397 = vrot.lane.b32.xlu0 %v395, 1
        %v398 = vpop.permute.xlu0 %397
        %399 = vrot.lane.b32.xlu0 %v395, 127
        %v400 = vpop.permute.xlu0 %399
        %v401 = vadd.f32 %v398, %v400
        %402 = vrot.lane.b32.xlu0 %v372, 1
        %v403 = vpop.permute.xlu0 %402
        %v405 = vsub.f32 %v372, %v403
        %v406 = vmul.f32 %v372, 2.0
        %v408 = vrot.slane %v401, 2
        %v410 = vadd.f32 %v406, %v408
        %412 = vset.pattern.permute.xlu0 0
        %413 = vperm.xlu0 %412, %v405
        %v414 = vpop.permute.xlu0 %413
        %v416 = vmul.f32 %v414, %v237
        %v417 = vadd.f32 %v410, %v416
        %v418 = vmul.f32 %v417, 0.25
        %419 = vst [vmem:[%s220 + $0x19] sm:$0x40] %v418
        %s420 = sand.u32 %s100, 1
        %s421 = scalar_lea.sflag [#allocation4], %s420
        %s422 = sand.u32 %s100, 1
        %s423 = smul.addr %s422, 32
        %s424 = scalar_lea.vmem [#allocation7], %s423
        // Predicated region
        $region37: #{tpu_custom_call.1} parent=27 // pred_check
          %p425 = pneg %p110
        $region38: #{tpu_custom_call.1} parent=27 // pred_check_branch
          %427 = sbr.rel (%p425) target = $region40
        $region39: #{tpu_custom_call.1} parent=27 // pred_region
          %s428 = smul.u32 4, %s27
          %s430 = ssub.s32 512, 512
          %431 = vsyncadd %s421, %s430
          %s432 = smul.addr %s26, 8
          %s433 = sadd.s32 %s428, %s432
          %s434 = smul.addr %s433, 128
          %s435 = scalar_lea.hbm %s2, %s434
          %s436 = sshll.u32 %s424, 4
          %s437 = int_to_ptr.vmem [resolvable:$true] %s436
          %442 = dma.vmem_to_hbm [thread:$0]  %s437, 512, %s435, %s421, 128, 128, 8
        $region40: #{tpu_custom_call.1} parent=27 // pred_fallthru
          _
      $region28: #{tpu_custom_call.1} parent=5 // pred_fallthru
        _
      %p443 = scmp.le.s32.totalorder 2, %s17
      // Predicated region
      $region41: #{tpu_custom_call.1} parent=5 // pred_check
        %p444 = pneg %p443
      $region42: #{tpu_custom_call.1} parent=5 // pred_check_branch
        %446 = sbr.rel (%p444) target = $region44
      $region43: #{tpu_custom_call.1} parent=5 // pred_region
        %s447 = ssub.s32 %s17, 2
        // Predicated region
        $region45: #{tpu_custom_call.1} parent=43 // pred_check
          %p448 = pneg %p116
        $region46: #{tpu_custom_call.1} parent=43 // pred_check_branch
          %450 = sbr.rel (%p448) target = $region48
        $region47: #{tpu_custom_call.1} parent=43 // pred_region
          %s451 = sand.u32 %s101, 1
          %s452 = scalar_lea.sflag [#allocation4], %s451
          %s453 = sand.u32 %s101, 1
          %s454 = smul.addr %s453, 32
          %s455 = scalar_lea.vmem [#allocation7], %s454
          %456 = dma.done %s452, 512
        $region48: #{tpu_custom_call.1} parent=43 // pred_fallthru
          _
      $region44: #{tpu_custom_call.1} parent=5 // pred_fallthru
        _
    $region6: #{tpu_custom_call.1} parent=1 // loop_footer
      %s21 = sadd.s32 1, %s17
    $region7: #{tpu_custom_call.1} parent=1 // loop_footer_branch
      %16 = sbr.rel target = $region3
    $region8: #{tpu_custom_call.1} parent=1 // loop_exit
      _
    %457 = vsyncpa [#allocation3], 1
    %s458 = scalar_lea.sflag [#allocation3], 1
    %459 = vsyncpa %s458, 1
    %460 = vsyncpa [#allocation6], 1
    %s461 = scalar_lea.sflag [#allocation6], 1
    %462 = vsyncpa %s461, 1
    %463 = vsyncpa [#allocation4], 1
    %s464 = scalar_lea.sflag [#allocation4], 1
    %465 = vsyncpa %s464, 1

</llo_original>
